<compile_context>
chip_gen: v6e
topology: v6e:2x2x1
jax: 0.10.0
libtpu: 0.0.40
codegen_flags: <defaults>
</compile_context>

<pallas_src>
import functools

import jax
import jax.numpy as jnp
from jax.experimental import pallas as pl
from jax.experimental.pallas import tpu as pltpu


_VMEM_LIMIT_BYTES = 32 * 1024 * 1024          # scoped-VMEM limit (fits v5e/v6e/v7x)
_VMEM_BUDGET_BYTES = 24 * 1024 * 1024         # target double-buffered footprint
_TARGET_OUT_BYTES_PER_STEP = 4 * 1024 * 1024  # copy kernels plateau at ~1-4 MiB tiles
_SCATTER_STAGE_BYTES = 2 * 1024 * 1024        # staging slab target for in-place path


# --------------------------------------------------------------------------- #
# Kernel 1: faithful concat forward, blocked over classes (auto-pipelined).
# --------------------------------------------------------------------------- #
def _prompt_cat_kernel(prefix_ref, ctx_ref, suffix_ref, out_ref, *, n_ctx, shared_ctx):
    # prefix_ref: (C, 1, D); ctx_ref: (C or 1, n_ctx, D); suffix_ref: (C, n_suf, D)
    # out_ref:    (C, 1 + n_ctx + n_suf, D)
    dt = out_ref.dtype
    c_blk = out_ref.shape[0]

    ctx = ctx_ref[...].astype(dt)                       # ctx may differ in dtype
    if shared_ctx:
        ctx = jnp.broadcast_to(ctx, (c_blk,) + ctx.shape[1:])

    # Fused [SOS | ctx] store starting at sequence row 0: the dominant store is
    # sublane-aligned; only the suffix store below starts at an unaligned row.
    out_ref[:, :1 + n_ctx, :] = jnp.concatenate(
        [prefix_ref[...].astype(dt), ctx], axis=1)
    out_ref[:, 1 + n_ctx:, :] = suffix_ref[...].astype(dt)   # class name + EOS + pad


def _pick_class_block(n_cls, n_ctx, n_suf, ctx_dim, out_itemsize, ctx_itemsize,
                      class_specific):
    seq_len = 1 + n_ctx + n_suf
    # Double-buffered VMEM bytes per class per grid step: prefix + suffix in,
    # full prompt out, plus the ctx tile when it scales with the class block.
    per_class = 2 * (1 + n_suf + seq_len) * ctx_dim * out_itemsize
    fixed = 0
    if class_specific:
        per_class += 2 * n_ctx * ctx_dim * ctx_itemsize
    else:
        fixed = 2 * n_ctx * ctx_dim * ctx_itemsize      # resident shared-ctx tile

    # Size for the HBM-roofline plateau, not for maximal tiles (giant tiles only
    # burn VMEM headroom on a mem-bound copy).
    out_per_class = seq_len * ctx_dim * out_itemsize
    c_blk = max(1, _TARGET_OUT_BYTES_PER_STEP // out_per_class)
    c_blk = min(c_blk, max(1, (_VMEM_BUDGET_BYTES - fixed) // per_class), n_cls)

    # Keep >= 4 grid steps when n_cls allows so input/output DMAs overlap past
    # the pipeline prologue/epilogue.
    if n_cls >= 4:
        c_blk = min(c_blk, max(1, n_cls // 4))
    elif n_cls >= 2:
        c_blk = min(c_blk, max(1, n_cls // 2))

    # Prefer an even step count so v7x's two TensorCores split the grid without
    # a tail imbalance (harmless on single-TC v5e/v6e: still bandwidth-bound).
    while c_blk > 1 and pl.cdiv(n_cls, c_blk) % 2 == 1:
        c_blk -= 1
    return int(c_blk)


def prompt_learner_forward(token_prefix, ctx, token_suffix, *,
                           class_specific_context, class_block=None):
    """Pallas implementation of PromptLearner.forward (class_token_position='end')."""
    n_cls, _, ctx_dim = token_prefix.shape
    n_suf = token_suffix.shape[1]
    dtype = token_prefix.dtype

    if class_specific_context:
        assert ctx.ndim == 3 and ctx.shape[0] == n_cls
        n_ctx = ctx.shape[1]
        ctx3 = ctx
    else:
        assert ctx.ndim == 2
        n_ctx = ctx.shape[0]
        ctx3 = ctx.reshape(1, n_ctx, ctx_dim)

    seq_len = 1 + n_ctx + n_suf

    if class_block is None:
        class_block = _pick_class_block(
            n_cls, n_ctx, n_suf, ctx_dim,
            jnp.dtype(dtype).itemsize, jnp.dtype(ctx.dtype).itemsize,
            class_specific_context)
    c_blk = int(class_block)
    grid = (pl.cdiv(n_cls, c_blk),)

    if class_specific_context:
        ctx_spec = pl.BlockSpec((c_blk, n_ctx, ctx_dim), lambda i: (i, 0, 0))
    else:
        # Constant block index: the shared ctx stays resident in VMEM across steps.
        ctx_spec = pl.BlockSpec((1, n_ctx, ctx_dim), lambda i: (0, 0, 0))

    kernel = functools.partial(_prompt_cat_kernel, n_ctx=n_ctx,
                               shared_ctx=not class_specific_context)

    return pl.pallas_call(
        kernel,
        out_shape=jax.ShapeDtypeStruct((n_cls, seq_len, ctx_dim), dtype),
        grid=grid,
        in_specs=[
            pl.BlockSpec((c_blk, 1, ctx_dim), lambda i: (i, 0, 0)),
            ctx_spec,
            pl.BlockSpec((c_blk, n_suf, ctx_dim), lambda i: (i, 0, 0)),
        ],
        out_specs=pl.BlockSpec((c_blk, seq_len, ctx_dim), lambda i: (i, 0, 0)),
        compiler_params=pltpu.CompilerParams(
            dimension_semantics=("parallel",),
            vmem_limit_bytes=_VMEM_LIMIT_BYTES,
        ),
    )(token_prefix, ctx3, token_suffix)


# --------------------------------------------------------------------------- #
# Kernel 2: in-place ctx writeback (production path — only ~n_ctx*D bytes per
# class of HBM traffic; prefix/suffix rows never move).
# --------------------------------------------------------------------------- #
def _ctx_scatter_kernel(ctx_ref, base_ref, out_ref, stage_ref, sem,
                        *, n_ctx, c_blk, steps_per_core, shared_ctx):
    # out_ref (== base_ref, aliased) lives in HBM; only sequence rows
    # [1, 1+n_ctx) of a c_blk-sized class window are rewritten per step.
    del base_ref
    core = pl.program_id(0)           # parallel chunk (1 or 2, self-contained)
    step = pl.program_id(1)           # sequential within a chunk
    blk = core * steps_per_core + step
    slot = step % 2

    def dst(b):
        row = pl.multiple_of(b * c_blk, c_blk)
        return out_ref.at[pl.ds(row, c_blk), pl.ds(1, n_ctx), :]

    if shared_ctx:
        # Stage the broadcast ctx once per chunk; every step's DMA reads it.
        @pl.when(step == 0)
        def _():
            stage_ref[...] = jnp.broadcast_to(
                ctx_ref[...].astype(stage_ref.dtype), stage_ref.shape)
        src_cur = stage_ref
        src_prev = stage_ref
    else:
        # Per-step stage into the current slot.  The last DMA reading this slot
        # (step-2) was already waited on at step-1, so this fill overlaps with
        # step-1's still-in-flight copy.
        stage_ref[slot] = ctx_ref[...].astype(stage_ref.dtype)
        src_cur = stage_ref.at[slot]
        src_prev = stage_ref.at[1 - slot]

    # Double-buffered writeback: wait on step-1's copy, then launch ours.
    @pl.when(step > 0)
    def _():
        pltpu.make_async_copy(src_prev, dst(blk - 1), sem.at[1 - slot]).wait()

    pltpu.make_async_copy(src_cur, dst(blk), sem.at[slot]).start()

    @pl.when(step == steps_per_core - 1)
    def _():
        pltpu.make_async_copy(src_cur, dst(blk), sem.at[slot]).wait()


def _largest_divisor_at_most(n, cap):
    cap = max(1, min(n, cap))
    for d in range(cap, 0, -1):
        if n % d == 0:
            return d
    return 1


def _pick_scatter_block(n_cls, n_ctx, ctx_dim, itemsize):
    # A couple of MiB of staging is plenty; keep >= 4 grid steps when possible
    # so the double-buffered writeback overlaps, and prefer an even step count
    # so the (2, steps//2) grid splits across v7x's two TensorCores.
    cap = max(1, _SCATTER_STAGE_BYTES // max(1, n_ctx * ctx_dim * itemsize))
    if n_cls >= 4:
        cap = min(cap, n_cls // 4)
    c_blk = _largest_divisor_at_most(n_cls, cap)
    while c_blk > 1 and (n_cls // c_blk) % 2 == 1:
        c_blk = _largest_divisor_at_most(n_cls, c_blk - 1)
    return c_blk


def prompt_learner_forward_inplace(base_prompts, ctx, *,
                                   class_specific_context, class_block=None):
    """In-place variant: `base_prompts` is the full token embedding (n_cls, seq, D)
    whose sequence rows [1, 1+n_ctx) are overwritten with the (broadcast) ctx.
    The buffer is aliased to the output, so prefix/suffix never move through HBM.
    Call under jit with base_prompts donated (donate_argnums) for true zero-copy."""
    n_cls, seq_len, ctx_dim = base_prompts.shape
    dtype = base_prompts.dtype

    if class_specific_context:
        assert ctx.ndim == 3 and ctx.shape[0] == n_cls
        n_ctx = ctx.shape[1]
        ctx3 = ctx
    else:
        assert ctx.ndim == 2
        n_ctx = ctx.shape[0]
        ctx3 = ctx.reshape(1, n_ctx, ctx_dim)
    assert 1 + n_ctx <= seq_len

    if class_block is None:
        class_block = _pick_scatter_block(n_cls, n_ctx, ctx_dim,
                                          jnp.dtype(dtype).itemsize)
    c_blk = int(class_block)
    if n_cls % c_blk != 0:
        raise ValueError(
            f"class_block={c_blk} must divide n_cls={n_cls}: the manual-DMA "
            "in-place path has no partial-block handling.")
    n_steps = n_cls // c_blk

    # Split the steps into two self-contained chunks when possible: each chunk
    # starts and completes its own DMA chain, so v7x's two TensorCores can run
    # them in parallel; on single-TC chips the chunks just run back-to-back.
    n_chunks = 2 if (n_steps >= 2 and n_steps % 2 == 0) else 1
    steps_per_core = n_steps // n_chunks
    grid = (n_chunks, steps_per_core)

    if class_specific_context:
        ctx_spec = pl.BlockSpec(
            (c_blk, n_ctx, ctx_dim),
            lambda c, s: (c * steps_per_core + s, 0, 0))
        stage_shape = (2, c_blk, n_ctx, ctx_dim)     # double-buffered staging
    else:
        ctx_spec = pl.BlockSpec((1, n_ctx, ctx_dim), lambda c, s: (0, 0, 0))
        stage_shape = (c_blk, n_ctx, ctx_dim)        # staged once per chunk

    kernel = functools.partial(_ctx_scatter_kernel, n_ctx=n_ctx, c_blk=c_blk,
                               steps_per_core=steps_per_core,
                               shared_ctx=not class_specific_context)

    return pl.pallas_call(
        kernel,
        out_shape=jax.ShapeDtypeStruct((n_cls, seq_len, ctx_dim), dtype),
        grid=grid,
        in_specs=[
            ctx_spec,
            pl.BlockSpec(memory_space=pl.ANY),   # base prompts stay in HBM, untouched
        ],
        out_specs=pl.BlockSpec(memory_space=pl.ANY),
        scratch_shapes=[
            pltpu.VMEM(stage_shape, dtype),
            pltpu.SemaphoreType.DMA((2,)),
        ],
        input_output_aliases={1: 0},             # output aliases base_prompts
        compiler_params=pltpu.CompilerParams(
            dimension_semantics=("parallel", "arbitrary"),
            vmem_limit_bytes=_VMEM_LIMIT_BYTES,
        ),
    )(ctx3, base_prompts)


# --------------------------------------------------------------------------- #
# Pure-JAX reference
# --------------------------------------------------------------------------- #
def _reference_forward(token_prefix, ctx, token_suffix, *, class_specific_context):
    n_cls = token_prefix.shape[0]
    dt = token_prefix.dtype
    if not class_specific_context:
        ctx = jnp.broadcast_to(ctx[None, :, :], (n_cls,) + ctx.shape)
    return jnp.concatenate([token_prefix, ctx.astype(dt), token_suffix], axis=1)


if __name__ == "__main__":
    # Small synthetic configuration consistent with the module:
    #   n_cls classes, n_ctx learnable context tokens, CLIP-like token embedding.
    n_cls = 6
    n_ctx = 4
    seq_len = 16          # stand-in for CLIP's 77-token context length
    ctx_dim = 128         # lane-dense embedding dim (stand-in for 512)
    n_suf = seq_len - 1 - n_ctx
    dtype = jnp.float32

    key = jax.random.PRNGKey(0)
    k_emb, k_ctx, k_ctx_cs = jax.random.split(key, 3)

    # Deterministic synthetic "token_embedding(tokenized_prompts)" output.
    embedding = jax.random.normal(k_emb, (n_cls, seq_len, ctx_dim), dtype=dtype)
    token_prefix = embedding[:, :1, :]                 # SOS embedding
    token_suffix = embedding[:, 1 + n_ctx:, :]         # class tokens + EOS + pads

    # Shared (non class-specific) learnable context, std=0.02 like nn.init.normal_.
    ctx = (0.02 * jax.random.normal(k_ctx, (n_ctx, ctx_dim))).astype(dtype)
    ref = _reference_forward(token_prefix, ctx, token_suffix,
                             class_specific_context=False)

    # ---- concat kernel, shared ctx -------------------------------------- #
    prompts = jax.block_until_ready(prompt_learner_forward(
        token_prefix, ctx, token_suffix, class_specific_context=False))
    assert prompts.shape == (n_cls, seq_len, ctx_dim)
    assert jnp.allclose(prompts, ref), "Pallas (shared ctx) mismatch vs reference"

    # ---- concat kernel, class-specific ctx ------------------------------ #
    ctx_cs = (0.02 * jax.random.normal(k_ctx_cs, (n_cls, n_ctx, ctx_dim))).astype(dtype)
    ref_cs = _reference_forward(token_prefix, ctx_cs, token_suffix,
                                class_specific_context=True)
    prompts_cs = jax.block_until_ready(prompt_learner_forward(
        token_prefix, ctx_cs, token_suffix, class_specific_context=True))
    assert jnp.allclose(prompts_cs, ref_cs), "Pallas (class-specific ctx) mismatch"

    # ---- in-place kernel, shared ctx (production path: donated base) ----- #
    inplace_shared = jax.jit(
        functools.partial(prompt_learner_forward_inplace,
                          class_specific_context=False),
        donate_argnums=(0,))
    base_shared = embedding + 0.0          # fresh buffer, safe to donate
    prompts_ip = jax.block_until_ready(inplace_shared(base_shared, ctx))
    assert jnp.allclose(prompts_ip, ref), "Pallas in-place (shared ctx) mismatch"

    # ---- in-place kernel, class-specific ctx (donated base) -------------- #
    inplace_cs = jax.jit(
        functools.partial(prompt_learner_forward_inplace,
                          class_specific_context=True),
        donate_argnums=(0,))
    base_cs = jnp.concatenate(
        [token_prefix, jnp.zeros((n_cls, n_ctx, ctx_dim), dtype), token_suffix], axis=1)
    prompts_ip_cs = jax.block_until_ready(inplace_cs(base_cs, ctx_cs))
    assert jnp.allclose(prompts_ip_cs, ref_cs), "Pallas in-place (class-specific) mismatch"

    print("KERNEL_OK")
</pallas_src>

<mosaic_0001>
module attributes {stable_mosaic.version = 11 : i64} {
  func.func @_prompt_cat_kernel(%arg0: i32, %arg1: memref<1x1x128xf32, #tpu.memory_space<vmem>>, %arg2: memref<1x4x128xf32, #tpu.memory_space<vmem>>, %arg3: memref<1x11x128xf32, #tpu.memory_space<vmem>>, %arg4: memref<1x16x128xf32, #tpu.memory_space<vmem>>) attributes {dimension_semantics = [#tpu.dimension_semantics<parallel>], iteration_bounds = array<i64: 6>, scalar_prefetch = 0 : i64, scratch_operands = 0 : i64, tpu.core_type = #tpu.core_type<tc>, window_params = [{transform_indices = @transform_0, window_bounds = array<i64: 1, 1, 128>}, {pipeline_mode = #tpu.pipeline_mode<synchronous>, transform_indices = @transform_1, window_bounds = array<i64: 1, 4, 128>}, {transform_indices = @transform_2, window_bounds = array<i64: 1, 11, 128>}, {transform_indices = @transform_3, window_bounds = array<i64: 1, 16, 128>}]} {
    %c0 = arith.constant 0 : index
    %c0_0 = arith.constant 0 : index
    %c0_1 = arith.constant 0 : index
    %0 = vector.load %arg2[%c0, %c0_0, %c0_1] : memref<1x4x128xf32, #tpu.memory_space<vmem>>, vector<1x4x128xf32>
    %c0_2 = arith.constant 0 : index
    %c0_3 = arith.constant 0 : index
    %c0_4 = arith.constant 0 : index
    %1 = vector.load %arg1[%c0_2, %c0_3, %c0_4] : memref<1x1x128xf32, #tpu.memory_space<vmem>>, vector<1x1x128xf32>
    %2 = tpu.concatenate %1, %0 in 1 : vector<1x1x128xf32>, vector<1x4x128xf32> -> vector<1x5x128xf32>
    %c0_5 = arith.constant 0 : index
    %c0_6 = arith.constant 0 : index
    %c0_7 = arith.constant 0 : index
    %3 = vector.load %arg4[%c0_5, %c0_6, %c0_7] : memref<1x16x128xf32, #tpu.memory_space<vmem>>, vector<1x5x128xf32>
    tpu.vector_store %arg4[%c0_5, %c0_6, %c0_7], %2 {strides = array<i32>} : memref<1x16x128xf32, #tpu.memory_space<vmem>>, vector<1x5x128xf32>,
    %c0_8 = arith.constant 0 : index
    %c0_9 = arith.constant 0 : index
    %c0_10 = arith.constant 0 : index
    %4 = vector.load %arg3[%c0_8, %c0_9, %c0_10] : memref<1x11x128xf32, #tpu.memory_space<vmem>>, vector<1x11x128xf32>
    %c0_11 = arith.constant 0 : index
    %c5 = arith.constant 5 : index
    %c0_12 = arith.constant 0 : index
    %5 = vector.load %arg4[%c0_11, %c5, %c0_12] : memref<1x16x128xf32, #tpu.memory_space<vmem>>, vector<1x11x128xf32>
    tpu.vector_store %arg4[%c0_11, %c5, %c0_12], %4 {strides = array<i32>} : memref<1x16x128xf32, #tpu.memory_space<vmem>>, vector<1x11x128xf32>,
    return
  }
  func.func @transform_0(%arg0: i32) -> (i32, i32, i32) {
    %c0_i32 = arith.constant 0 : i32
    %c0_i32_0 = arith.constant 0 : i32
    %c0_i32_1 = arith.constant 0 : i32
    return %arg0, %c0_i32, %c0_i32_0 : i32, i32, i32
  }
  func.func @transform_1(%arg0: i32) -> (i32, i32, i32) {
    %c0_i32 = arith.constant 0 : i32
    %c0_i32_0 = arith.constant 0 : i32
    %c0_i32_1 = arith.constant 0 : i32
    %c0_i32_2 = arith.constant 0 : i32
    return %c0_i32, %c0_i32_0, %c0_i32_1 : i32, i32, i32
  }
  func.func @transform_2(%arg0: i32) -> (i32, i32, i32) {
    %c0_i32 = arith.constant 0 : i32
    %c0_i32_0 = arith.constant 0 : i32
    %c0_i32_1 = arith.constant 0 : i32
    return %arg0, %c0_i32, %c0_i32_0 : i32, i32, i32
  }
  func.func @transform_3(%arg0: i32) -> (i32, i32, i32) {
    %c0_i32 = arith.constant 0 : i32
    %c0_i32_0 = arith.constant 0 : i32
    %c0_i32_1 = arith.constant 0 : i32
    return %arg0, %c0_i32, %c0_i32_0 : i32, i32, i32
  }
}

</mosaic_0001>

<llo_original>
// kernel: tpu_custom_call.1
$region0: #{tpu_custom_call.1}
  #allocation0 [shape = 'u32[]', space=smem, size = 0x4, offset = 0x4, fixed_abs, tag = 'smem constant byte address 0x4 - core index']
  #allocation1 [shape = 'u32[144,128]{1,0:T(1,128)}', space=vmem, size = 0x12000, scoped, tag = 'internal scratch']
  %s0 = inlined_call_operand.vmem [shape: f32[6,1,128], index: 0, kind: input, shape index: {}]
  %s1 = inlined_call_operand.vmem [shape: f32[1,4,128], index: 1, kind: input, shape index: {}]
  %s2 = inlined_call_operand.vmem [shape: f32[6,11,128], index: 2, kind: input, shape index: {}]
  %s3 = inlined_call_operand.hbm [shape: f32[6,16,128], index: 3, kind: output, shape index: {}]
  %s4 = sld [smem:[#allocation0]]
  $region45: #{tpu_custom_call.1} parent=0
    _
  %s6 = ssub.s32 1, %s4
  %s7 = scalar_select 0, %s6, %s4
  $region1: #{tpu_custom_call.1} parent=0
    #allocation2 [shape = 'u8[16384]{0}', space=vmem, size = 0x4000, scoped, tag = 'output window, operand 0']
    #allocation3 [shape = 's32[2]{0}', space=sflag, size = 0x8, scoped, tag = 'scoped memory for tpu_custom_call.1']
    %8 = vsyncpa [#allocation3], 0
    %s9 = scalar_lea.sflag [#allocation3], 1
    %10 = vsyncpa %s9, 0
    loop: start=0, step=1, limit=8
    $region2: #{tpu_custom_call.1} parent=1 // loop_pre_header
      _
    $region3: #{tpu_custom_call.1} parent=1 // loop_header
      %s12 = sphi 0, %s16
      %p13 = scmp.ge.s32.totalorder %s12, 8
      %s22 = sphi 0, %s24
      %s25 = sphi 0, %s22
      %s26 = sphi 0, %s25
      %s42 = sphi 0, %s26
      %s46 = sphi 0, %s46
      %s48 = sphi 0, %s46
      %s49 = sphi 0, %s48
      %s63 = sphi 0, %s49
      %s69 = sphi 0, %s71
      %s72 = sphi 0, %s69
      %s73 = sphi 0, %s72
      %s89 = sphi 0, %s73
      %s95 = sphi 0, %s97
      %s98 = sphi 0, %s95
      %s99 = sphi 0, %s98
      %s115 = sphi 0, %s99
    $region4: #{tpu_custom_call.1} parent=1 // loop_header_branch
      %15 = sbr.rel (%p13) target = $region8
    $region5: #{tpu_custom_call.1} parent=1 // loop_body
      %s17 = ssub.s32 %s12, 1
      %s18 = ssub.s32 %s12, 2
      %s19 = sadd.s32 %s12, 1
      %s20 = ssub.s32 %s12, %s19
      %p21 = scmp.eq.s32.totalorder %s20, 0
      %s23 = sadd.s32 %s22, 1
      %s24 = scalar_select %p21, %s22, %s23
      %p27 = pneg %p21
      %p28 = scmp.eq.s32.totalorder %s12, 5
      %p29 = por %p27, %p28
      %p30 = scmp.ne.s32.totalorder %s22, %s25
      %p31 = scmp.eq.s32.totalorder %s12, 0
      %p32 = por %p30, %p31
      %p33 = scmp.ne.s32.totalorder %s22, %s25
      %p34 = scmp.eq.s32.totalorder %s17, 5
      %p35 = por %p33, %p34
      %p36 = scmp.ne.s32.totalorder %s25, %s26
      %p37 = scmp.eq.s32.totalorder %s17, 0
      %p38 = por %p36, %p37
      %p39 = scmp.ne.s32.totalorder %s25, %s26
      %p40 = scmp.eq.s32.totalorder %s18, 5
      %p41 = por %p39, %p40
      %p43 = scmp.ne.s32.totalorder %s26, %s42
      %p44 = scmp.eq.s32.totalorder %s18, 0
      %p45 = por %p43, %p44
      %s47 = sadd.s32 %s46, 1
      %p50 = scmp.eq.s32.totalorder %s12, 5
      %p51 = scmp.ne.s32.totalorder %s46, %s48
      %p52 = scmp.eq.s32.totalorder %s12, 0
      %p53 = por %p51, %p52
      %p54 = scmp.ne.s32.totalorder %s46, %s48
      %p55 = scmp.eq.s32.totalorder %s17, 5
      %p56 = por %p54, %p55
      %p57 = scmp.ne.s32.totalorder %s48, %s49
      %p58 = scmp.eq.s32.totalorder %s17, 0
      %p59 = por %p57, %p58
      %p60 = scmp.ne.s32.totalorder %s48, %s49
      %p61 = scmp.eq.s32.totalorder %s18, 5
      %p62 = por %p60, %p61
      %p64 = scmp.ne.s32.totalorder %s49, %s63
      %p65 = scmp.eq.s32.totalorder %s18, 0
      %p66 = por %p64, %p65
      %s67 = ssub.s32 %s12, %s19
      %p68 = scmp.eq.s32.totalorder %s67, 0
      %s70 = sadd.s32 %s69, 1
      %s71 = scalar_select %p68, %s69, %s70
      %p74 = pneg %p68
      %p75 = scmp.eq.s32.totalorder %s12, 5
      %p76 = por %p74, %p75
      %p77 = scmp.ne.s32.totalorder %s69, %s72
      %p78 = scmp.eq.s32.totalorder %s12, 0
      %p79 = por %p77, %p78
      %p80 = scmp.ne.s32.totalorder %s69, %s72
      %p81 = scmp.eq.s32.totalorder %s17, 5
      %p82 = por %p80, %p81
      %p83 = scmp.ne.s32.totalorder %s72, %s73
      %p84 = scmp.eq.s32.totalorder %s17, 0
      %p85 = por %p83, %p84
      %p86 = scmp.ne.s32.totalorder %s72, %s73
      %p87 = scmp.eq.s32.totalorder %s18, 5
      %p88 = por %p86, %p87
      %p90 = scmp.ne.s32.totalorder %s73, %s89
      %p91 = scmp.eq.s32.totalorder %s18, 0
      %p92 = por %p90, %p91
      %s93 = ssub.s32 %s12, %s19
      %p94 = scmp.eq.s32.totalorder %s93, 0
      %s96 = sadd.s32 %s95, 1
      %s97 = scalar_select %p94, %s95, %s96
      %p100 = pneg %p94
      %p101 = scmp.eq.s32.totalorder %s12, 5
      %p102 = por %p100, %p101
      %p103 = scmp.ne.s32.totalorder %s95, %s98
      %p104 = scmp.eq.s32.totalorder %s12, 0
      %p105 = por %p103, %p104
      %p106 = scmp.ne.s32.totalorder %s95, %s98
      %p107 = scmp.eq.s32.totalorder %s17, 5
      %p108 = por %p106, %p107
      %p109 = scmp.ne.s32.totalorder %s98, %s99
      %p110 = scmp.eq.s32.totalorder %s17, 0
      %p111 = por %p109, %p110
      %p112 = scmp.ne.s32.totalorder %s98, %s99
      %p113 = scmp.eq.s32.totalorder %s18, 5
      %p114 = por %p112, %p113
      %p116 = scmp.ne.s32.totalorder %s99, %s115
      %p117 = scmp.eq.s32.totalorder %s18, 0
      %p118 = por %p116, %p117
      %p119 = scmp.le.s32.totalorder 1, %s12
      %p120 = scmp.lt.s32.totalorder %s12, 7
      %p121 = pnand %p119, %p120
      %p122 = pneg %p121
      // Predicated region
      $region9: #{tpu_custom_call.1} parent=5 // pred_check
        _
      $region10: #{tpu_custom_call.1} parent=5 // pred_check_branch
        %124 = sbr.rel (%p121) target = $region12
      $region11: #{tpu_custom_call.1} parent=5 // pred_region
        %s125 = ssub.s32 %s12, 1
        // Predicated region
        $region13: #{tpu_custom_call.1} parent=11 // pred_check
          %p126 = pneg %p59
        $region14: #{tpu_custom_call.1} parent=11 // pred_check_branch
          %128 = sbr.rel (%p126) target = $region16
        $region15: #{tpu_custom_call.1} parent=11 // pred_region
          _
        $region16: #{tpu_custom_call.1} parent=11 // pred_fallthru
          _
      $region12: #{tpu_custom_call.1} parent=5 // pred_fallthru
        _
      %p129 = scmp.lt.s32.totalorder %s12, 6
      // Predicated region
      $region17: #{tpu_custom_call.1} parent=5 // pred_check
        %p130 = pneg %p129
      $region18: #{tpu_custom_call.1} parent=5 // pred_check_branch
        %132 = sbr.rel (%p130) target = $region20
      $region19: #{tpu_custom_call.1} parent=5 // pred_region
        // Predicated region
        $region21: #{tpu_custom_call.1} parent=19 // pred_check
          %p133 = pneg %p32
        $region22: #{tpu_custom_call.1} parent=19 // pred_check_branch
          %135 = sbr.rel (%p133) target = $region24
        $region23: #{tpu_custom_call.1} parent=19 // pred_region
          %p136 = scmp.lt.s32.totalorder %s12, 5
          %s137 = scalar_select %p136, %s12, 5
          %s138 = scalar_lea.vmem %s0, %s137
        $region24: #{tpu_custom_call.1} parent=19 // pred_fallthru
          _
        // Predicated region
        $region25: #{tpu_custom_call.1} parent=19 // pred_check
          %p139 = pneg %p79
        $region26: #{tpu_custom_call.1} parent=19 // pred_check_branch
          %141 = sbr.rel (%p139) target = $region28
        $region27: #{tpu_custom_call.1} parent=19 // pred_region
          %p142 = scmp.lt.s32.totalorder %s12, 5
          %s143 = scalar_select %p142, %s12, 5
          %s144 = smul.addr %s143, 2
          %s145 = smul.addr %s144, 8
          %s146 = scalar_lea.vmem %s2, %s145
        $region28: #{tpu_custom_call.1} parent=19 // pred_fallthru
          _
      $region20: #{tpu_custom_call.1} parent=5 // pred_fallthru
        _
      %p147 = scmp.le.s32.totalorder 1, %s12
      %p148 = scmp.lt.s32.totalorder %s12, 7
      %p149 = pnand %p147, %p148
      %p150 = pneg %p149
      // Predicated region
      $region29: #{tpu_custom_call.1} parent=5 // pred_check
        _
      $region30: #{tpu_custom_call.1} parent=5 // pred_check_branch
        %152 = sbr.rel (%p149) target = $region32
      $region31: #{tpu_custom_call.1} parent=5 // pred_region
        %s153 = ssub.s32 %s12, 1
        %p154 = scmp.lt.s32.totalorder %s17, 5
        %s155 = scalar_select %p154, %s17, 5
        %s156 = scalar_lea.vmem %s0, %s155
        %p157 = pneg %p38
        %p158 = pneg %p35
        %p159 = pneg %p59
        %p160 = pneg %p56
        %p161 = scmp.lt.s32.totalorder %s17, 5
        %s162 = scalar_select %p161, %s17, 5
        %s163 = smul.addr %s162, 2
        %s164 = smul.addr %s163, 8
        %s165 = scalar_lea.vmem %s2, %s164
        %p166 = pneg %p85
        %p167 = pneg %p82
        %p168 = pneg %p111
        %p169 = pneg %p108
        %s170 = sand.u32 %s98, 1
        %s171 = scalar_lea.sflag [#allocation3], %s170
        %s172 = sand.u32 %s98, 1
        %s173 = smul.addr %s172, 16
        %s174 = scalar_lea.vmem [#allocation2], %s173
        %p175 = scmp.lt.s32.totalorder %s17, 5
        %s176 = scalar_select %p175, %s17, 5
        %s177 = scalar_lea.vmem %s0, %s176
        %p178 = scmp.lt.s32.totalorder %s17, 5
        %s179 = scalar_select %p178, %s17, 5
        %s180 = smul.addr %s179, 2
        %s181 = smul.addr %s180, 8
        %s182 = scalar_lea.vmem %s2, %s181
        %v183 = vld [vmem:[%s1] sm:$0xf]
        %v184 = vld [vmem:[%s177] sm:$0x1]
        %v186 = vrot.slane %v183, 7
        %vm188 = vcmask 1040384
        %v189 = vsel %vm188, %v184, %v186
        %190 = vst [vmem:[%s174] sm:$0x1f] %v189
        %v191 = vld [vmem:[%s182] sm:$0xff]
        %v192 = vld [vmem:[%s182 + $0x8] sm:$0x7]
        %193 = vst [vmem:[%s174 + $0x5] sm:$0xff] %v191
        %194 = vst [vmem:[%s174 + $0xd] sm:$0x7] %v192
        %s195 = sand.u32 %s98, 1
        %s196 = scalar_lea.sflag [#allocation3], %s195
        %s197 = sand.u32 %s98, 1
        %s198 = smul.addr %s197, 16
        %s199 = scalar_lea.vmem [#allocation2], %s198
        // Predicated region
        $region33: #{tpu_custom_call.1} parent=31 // pred_check
          %p200 = pneg %p108
        $region34: #{tpu_custom_call.1} parent=31 // pred_check_branch
          %202 = sbr.rel (%p200) target = $region36
        $region35: #{tpu_custom_call.1} parent=31 // pred_region
          %s204 = ssub.s32 256, 256
          %205 = vsyncadd %s196, %s204
          %s206 = smul.addr %s17, 2
          %s207 = smul.addr %s206, 128
          %s208 = scalar_lea.hbm %s3, %s207
          %s209 = sshll.u32 %s199, 4
          %s210 = int_to_ptr.vmem [resolvable:$true] %s209
          %215 = dma.vmem_to_hbm [thread:$0]  %s210, 256, %s208, %s196, 128, 128, 8
        $region36: #{tpu_custom_call.1} parent=31 // pred_fallthru
          _
      $region32: #{tpu_custom_call.1} parent=5 // pred_fallthru
        _
      %p216 = scmp.le.s32.totalorder 2, %s12
      // Predicated region
      $region37: #{tpu_custom_call.1} parent=5 // pred_check
        %p217 = pneg %p216
      $region38: #{tpu_custom_call.1} parent=5 // pred_check_branch
        %219 = sbr.rel (%p217) target = $region40
      $region39: #{tpu_custom_call.1} parent=5 // pred_region
        %s220 = ssub.s32 %s12, 2
        // Predicated region
        $region41: #{tpu_custom_call.1} parent=39 // pred_check
          %p221 = pneg %p114
        $region42: #{tpu_custom_call.1} parent=39 // pred_check_branch
          %223 = sbr.rel (%p221) target = $region44
        $region43: #{tpu_custom_call.1} parent=39 // pred_region
          %s224 = sand.u32 %s99, 1
          %s225 = scalar_lea.sflag [#allocation3], %s224
          %s226 = sand.u32 %s99, 1
          %s227 = smul.addr %s226, 16
          %s228 = scalar_lea.vmem [#allocation2], %s227
          %229 = dma.done %s225, 256
        $region44: #{tpu_custom_call.1} parent=39 // pred_fallthru
          _
      $region40: #{tpu_custom_call.1} parent=5 // pred_fallthru
        _
    $region6: #{tpu_custom_call.1} parent=1 // loop_footer
      %s16 = sadd.s32 1, %s12
    $region7: #{tpu_custom_call.1} parent=1 // loop_footer_branch
      %11 = sbr.rel target = $region3
    $region8: #{tpu_custom_call.1} parent=1 // loop_exit
      _
    %230 = vsyncpa [#allocation3], 1
    %s231 = scalar_lea.sflag [#allocation3], 1
    %232 = vsyncpa %s231, 1

</llo_original>
